<compile_context>
chip_gen: v7x
topology: tpu7x:2x2x1
jax: 0.10.0
libtpu: 0.0.40
codegen_flags: <defaults>
</compile_context>

<pallas_src>
import math
import jax
import jax.numpy as jnp
from jax.experimental import pallas as pl
from jax.experimental.pallas import tpu as pltpu


def make_pe_table(max_len, d_model, dtype=jnp.float32):
    """Matches the PyTorch buffer: pe[p, 2i] = sin(p*w_i), pe[p, 2i+1] = cos(p*w_i)."""
    position = jnp.arange(0.0, max_len, dtype=jnp.float32)[:, None]            # (L, 1)
    div_term = jnp.exp(
        jnp.arange(0.0, d_model, 2.0, dtype=jnp.float32)
        * (-(math.log(10000.0) / d_model))
    )                                                                           # (D/2,)
    angles = position * div_term                                                # (L, D/2)
    pe = jnp.zeros((max_len, d_model), dtype=jnp.float32)
    pe = pe.at[:, 0::2].set(jnp.sin(angles))
    pe = pe.at[:, 1::2].set(jnp.cos(angles))
    return pe.astype(dtype)


def _pe_add_kernel(x_ref, pe_ref, o_ref):
    # x_ref: (B, ts, D) tile; pe_ref: (ts, D) tile (shared across batch).
    x = x_ref[...].astype(jnp.float32)
    pe = pe_ref[...].astype(jnp.float32)
    o_ref[...] = (x + pe[None, :, :]).astype(o_ref.dtype)


def positional_encoding_forward(
    x,
    pe,
    start_indx,
    dropout_p=0.0,
    training=False,
    seq_tile=1024,
    vmem_tile_budget_bytes=40 * 1024 * 1024,
):
    """x: (B, S, D); pe: (max_len, D) precomputed table. Returns x + pe[start:start+S]."""
    B, S, D = x.shape
    pe_slice = pe[start_indx:start_indx + S]  # (S, D), static slice

    itemsize = jnp.dtype(x.dtype).itemsize
    # Sublane alignment for the seq axis of the tiles.
    align = 16 if itemsize == 2 else 8

    # Resident VMEM per grid step (double-buffered in/out x-tiles + pe tile):
    #   2 * ts * D * (2 * B * itemsize  +  4 bytes for the f32 pe row)
    bytes_per_seq_row = 2 * (2 * B * itemsize + 4) * D
    ts_max = max(align, (vmem_tile_budget_bytes // max(bytes_per_seq_row, 1)) // align * align)

    if S <= min(seq_tile, ts_max):
        ts = S                      # single full block along seq (no alignment needed)
    else:
        ts = min(seq_tile, ts_max)
        ts = max(align, (ts // align) * align)

    grid = (pl.cdiv(S, ts),)

    out = pl.pallas_call(
        _pe_add_kernel,
        out_shape=jax.ShapeDtypeStruct((B, S, D), x.dtype),
        grid_spec=pltpu.PrefetchScalarGridSpec(
            num_scalar_prefetch=0,
            grid=grid,
            in_specs=[
                pl.BlockSpec((B, ts, D), lambda i: (0, i, 0)),
                pl.BlockSpec((ts, D), lambda i: (i, 0)),
            ],
            out_specs=pl.BlockSpec((B, ts, D), lambda i: (0, i, 0)),
        ),
        compiler_params=pltpu.CompilerParams(
            dimension_semantics=("parallel",),
            vmem_limit_bytes=64 * 1024 * 1024,
        ),
    )(x, pe_slice)

    # nn.Dropout is identity in eval/inference mode.
    # TODO(synk): training-mode stochastic dropout (pltpu.prng_seed + prng_random_bits) not implemented.
    if training and dropout_p > 0.0:
        raise NotImplementedError("training-mode dropout not implemented in this kernel")
    return out


if __name__ == "__main__":
    # Small shapes implied by the module: (batch, seq, d_model) transformer input.
    batch, seq, d_model = 2, 8, 32
    max_len, start_indx = 64, 3

    key = jax.random.PRNGKey(0)
    x = jax.random.normal(key, (batch, seq, d_model), dtype=jnp.float32)

    pe = make_pe_table(max_len, d_model, dtype=jnp.float32)

    y = positional_encoding_forward(x, pe, start_indx, dropout_p=0.1, training=False)
    y = jax.block_until_ready(y)

    # Pure-JAX reference with identical semantics (eval-mode dropout == identity).
    ref = x + pe[None, start_indx:start_indx + seq, :]

    assert y.shape == x.shape and y.dtype == x.dtype
    assert jnp.allclose(y, ref, atol=1e-6, rtol=1e-6), "mismatch vs reference"
    print("KERNEL_OK")
</pallas_src>

<mosaic_0001>
module attributes {stable_mosaic.version = 11 : i64} {
  func.func @_pe_add_kernel(%arg0: i32, %arg1: memref<2x8x32xf32, #tpu.memory_space<vmem>>, %arg2: memref<8x32xf32, #tpu.memory_space<vmem>>, %arg3: memref<2x8x32xf32, #tpu.memory_space<vmem>>) attributes {dimension_semantics = [#tpu.dimension_semantics<parallel>], iteration_bounds = array<i64: 1>, scalar_prefetch = 0 : i64, scratch_operands = 0 : i64, tpu.core_type = #tpu.core_type<tc>, window_params = [{transform_indices = @transform_0, window_bounds = array<i64: 2, 8, 32>}, {transform_indices = @transform_1, window_bounds = array<i64: 8, 32>}, {transform_indices = @transform_2, window_bounds = array<i64: 2, 8, 32>}]} {
    %c0 = arith.constant 0 : index
    %c0_0 = arith.constant 0 : index
    %c0_1 = arith.constant 0 : index
    %0 = vector.load %arg1[%c0, %c0_0, %c0_1] : memref<2x8x32xf32, #tpu.memory_space<vmem>>, vector<2x8x32xf32>
    %c0_2 = arith.constant 0 : index
    %c0_3 = arith.constant 0 : index
    %1 = vector.load %arg2[%c0_2, %c0_3] : memref<8x32xf32, #tpu.memory_space<vmem>>, vector<8x32xf32>
    %2 = vector.shape_cast %1 : vector<8x32xf32> to vector<1x8x32xf32>
    %3 = vector.broadcast %2 : vector<1x8x32xf32> to vector<2x8x32xf32>
    %4 = arith.addf %0, %3 : vector<2x8x32xf32>
    %c0_4 = arith.constant 0 : index
    %c0_5 = arith.constant 0 : index
    %c0_6 = arith.constant 0 : index
    %5 = vector.load %arg3[%c0_4, %c0_5, %c0_6] : memref<2x8x32xf32, #tpu.memory_space<vmem>>, vector<2x8x32xf32>
    tpu.vector_store %arg3[%c0_4, %c0_5, %c0_6], %4 {strides = array<i32>} : memref<2x8x32xf32, #tpu.memory_space<vmem>>, vector<2x8x32xf32>,
    return
  }
  func.func @transform_0(%arg0: i32) -> (i32, i32, i32) {
    %c0_i32 = arith.constant 0 : i32
    %c0_i32_0 = arith.constant 0 : i32
    %c0_i32_1 = arith.constant 0 : i32
    return %c0_i32, %arg0, %c0_i32_0 : i32, i32, i32
  }
  func.func @transform_1(%arg0: i32) -> (i32, i32) {
    %c0_i32 = arith.constant 0 : i32
    %c0_i32_0 = arith.constant 0 : i32
    return %arg0, %c0_i32 : i32, i32
  }
  func.func @transform_2(%arg0: i32) -> (i32, i32, i32) {
    %c0_i32 = arith.constant 0 : i32
    %c0_i32_0 = arith.constant 0 : i32
    %c0_i32_1 = arith.constant 0 : i32
    return %c0_i32, %arg0, %c0_i32_0 : i32, i32, i32
  }
}

</mosaic_0001>

<llo_original>
// kernel: tpu_custom_call.1
$region0: #{tpu_custom_call.1}
  #allocation0 [shape = 'u32[]', space=smem, size = 0x4, offset = 0x4, fixed_abs, tag = 'smem constant byte address 0x4 - core index']
  #allocation1 [shape = 'u32[144,128]{1,0:T(1,128)}', space=vmem, size = 0x12000, scoped, tag = 'internal scratch']
  %s0 = inlined_call_operand.hbm [shape: f32[2,8,32], index: 0, kind: input, shape index: {}]
  %s1 = inlined_call_operand.hbm [shape: f32[8,32], index: 1, kind: input, shape index: {}]
  %s2 = inlined_call_operand.hbm [shape: f32[2,8,32], index: 2, kind: output, shape index: {}]
  %s3 = sld [smem:[#allocation0]]
  $region26: #{tpu_custom_call.1} parent=0
    _
  %s5 = ssub.s32 1, %s3
  %s6 = scalar_select 0, %s5, %s3
  $region1: #{tpu_custom_call.1} parent=0
    #allocation2 [shape = 'u8[8192]{0}', space=vmem, size = 0x2000, scoped, tag = 'input window, operand 0, single buffered']
    #allocation3 [shape = 's32[1]{0}', space=sflag, size = 0x4, scoped, tag = 'scoped memory for tpu_custom_call.1']
    #allocation4 [shape = 's32[1]{0}', space=sflag, size = 0x4, scoped, tag = 'scoped memory for tpu_custom_call.1']
    #allocation5 [shape = 'u8[4096]{0}', space=vmem, size = 0x1000, scoped, tag = 'input window, operand 1, single buffered']
    #allocation6 [shape = 's32[1]{0}', space=sflag, size = 0x4, scoped, tag = 'scoped memory for tpu_custom_call.1']
    #allocation7 [shape = 'u8[8192]{0}', space=vmem, size = 0x2000, scoped, tag = 'output window, operand 0, single buffered']
    %7 = vsyncpa [#allocation3], 0
    %8 = vsyncpa [#allocation6], 0
    %9 = vsyncpa [#allocation4], 0
    // Predicated region
    $region2: #{tpu_custom_call.1} parent=1 // pred_check
      _
    $region3: #{tpu_custom_call.1} parent=1 // pred_check_branch
      %11 = sbr.rel (0) target = $region5
    $region4: #{tpu_custom_call.1} parent=1 // pred_region
      %s13 = ssub.s32 256, 256
      %14 = vsyncadd [#allocation3], %s13
      %s15 = sshll.u32 [#allocation2], 4
      %s16 = int_to_ptr.vmem [resolvable:$true] %s15
      %21 = dma.hbm_to_vmem [thread:$0]  %s0, 256, %s16, [#allocation3], 128, 128, 8
    $region5: #{tpu_custom_call.1} parent=1 // pred_fallthru
      _
    // Predicated region
    $region6: #{tpu_custom_call.1} parent=1 // pred_check
      _
    $region7: #{tpu_custom_call.1} parent=1 // pred_check_branch
      %23 = sbr.rel (0) target = $region9
    $region8: #{tpu_custom_call.1} parent=1 // pred_region
      %s25 = ssub.s32 128, 128
      %26 = vsyncadd [#allocation6], %s25
      %s28 = sshll.u32 [#allocation5], 4
      %s29 = int_to_ptr.vmem [resolvable:$true] %s28
      %31 = dma.hbm_to_vmem [thread:$0]  %s1, 128, %s29, [#allocation6]
    $region9: #{tpu_custom_call.1} parent=1 // pred_fallthru
      _
    // Predicated region
    $region10: #{tpu_custom_call.1} parent=1 // pred_check
      _
    $region11: #{tpu_custom_call.1} parent=1 // pred_check_branch
      %33 = sbr.rel (0) target = $region13
    $region12: #{tpu_custom_call.1} parent=1 // pred_region
      %34 = dma.done [#allocation3], 256
    $region13: #{tpu_custom_call.1} parent=1 // pred_fallthru
      _
    // Predicated region
    $region14: #{tpu_custom_call.1} parent=1 // pred_check
      _
    $region15: #{tpu_custom_call.1} parent=1 // pred_check_branch
      %36 = sbr.rel (0) target = $region17
    $region16: #{tpu_custom_call.1} parent=1 // pred_region
      %37 = dma.done [#allocation6], 128
    $region17: #{tpu_custom_call.1} parent=1 // pred_fallthru
      _
    %v38 = vld [vmem:[#allocation2] sm:$0xff]
    %v39 = vld [vmem:[#allocation2 + $0x8] sm:$0xff]
    %v40 = vld [vmem:[#allocation5] sm:$0xff]
    %v41 = vadd.f32 %v38, %v40
    %v42 = vadd.f32 %v39, %v40
    %vm43 = vcmask 261120
    %44 = vst.msk [vmem:[#allocation7] sm:$0xff] %vm43, %v41
    %45 = vst.msk [vmem:[#allocation7 + $0x8] sm:$0xff] %vm43, %v42
    // Predicated region
    $region18: #{tpu_custom_call.1} parent=1 // pred_check
      _
    $region19: #{tpu_custom_call.1} parent=1 // pred_check_branch
      %47 = sbr.rel (0) target = $region21
    $region20: #{tpu_custom_call.1} parent=1 // pred_region
      %s49 = ssub.s32 256, 256
      %50 = vsyncadd [#allocation4], %s49
      %s51 = sshll.u32 [#allocation7], 4
      %s52 = int_to_ptr.vmem [resolvable:$true] %s51
      %57 = dma.vmem_to_hbm [thread:$0]  %s52, 256, %s2, [#allocation4], 128, 128, 8
    $region21: #{tpu_custom_call.1} parent=1 // pred_fallthru
      _
    // Predicated region
    $region22: #{tpu_custom_call.1} parent=1 // pred_check
      _
    $region23: #{tpu_custom_call.1} parent=1 // pred_check_branch
      %59 = sbr.rel (0) target = $region25
    $region24: #{tpu_custom_call.1} parent=1 // pred_region
      %60 = dma.done [#allocation4], 256
    $region25: #{tpu_custom_call.1} parent=1 // pred_fallthru
      _
    %61 = vsyncpa [#allocation3], 1
    %62 = vsyncpa [#allocation6], 1
    %63 = vsyncpa [#allocation4], 1

</llo_original>
